<compile_context>
chip_gen: v7x
topology: tpu7x:2x2x1
jax: 0.10.0
libtpu: 0.0.40
codegen_flags: <defaults>
</compile_context>

<pallas_src>
import functools

import jax
import jax.numpy as jnp
from jax.experimental import pallas as pl
from jax.experimental.pallas import tpu as pltpu


def _round8(n):
    return -(-n // 8) * 8


# ----------------------------- Pallas kernel --------------------------------
def vae_forward_kernel(a_ref, p_ref, o_ref, *, dims, lanes, vrow):
    """Single-invocation VAE forward.

    a_ref : (B, dx+Z+1) packed activations  [ x_ncl_flat | eps | label ]
    p_ref : (vrow+8, 128) lane-packed parameter slab (see pack_vae_params)
    o_ref : (B, dx) x_mean, already in NCL (channel-major) element order
    """
    dx, H1, Z, H2 = dims
    l1, l2, l3, l4 = lanes
    f32 = jnp.float32

    a = a_ref[...]
    x = a[:, 0:dx]                       # (B, Dx)  NCL-flattened input
    eps = a[:, dx:dx + Z]                # (B, Z)   reparameterization noise
    lab = a[:, dx + Z:dx + Z + 1]        # (B, 1)   labels[:, :, 0]

    # Parameter views: static slices of the single lane-packed slab (no extra
    # DMAs; row starts are 8-aligned, lane starts are the packed column bases).
    w1x = p_ref[0:dx, l1:l1 + H1]        # (Dx, H1) encoder weight (x part, rows pre-permuted)
    wmv = p_ref[0:H1, l2:l2 + 2 * Z]     # (H1, 2Z) fused [z_mean | z_logvar]
    w2z = p_ref[0:Z, l3:l3 + H2]         # (Z,  H2) decoder weight (z part)
    wg = p_ref[0:H2, l4:l4 + dx]         # (H2, Dx) gen_x_mean weight (cols pre-permuted)
    # 1-row vectors (VPU-broadcast at use; stride-0 sublane-broadcast reads
    # were judged neutral at B=2 and skipped for lowering robustness).
    w1y = p_ref[vrow + 0:vrow + 1, l1:l1 + H1]   # encoder label column
    b1 = p_ref[vrow + 1:vrow + 2, l1:l1 + H1]
    bmv = p_ref[vrow + 2:vrow + 3, l2:l2 + 2 * Z]
    w2y = p_ref[vrow + 3:vrow + 4, l3:l3 + H2]   # decoder label column
    b2 = p_ref[vrow + 4:vrow + 5, l3:l3 + H2]
    bg = p_ref[vrow + 5:vrow + 6, l4:l4 + dx]

    # ---- encoder: h1 = tanh(Linear(cat(x_flat, label))) --------------------
    # label concat column handled as a VPU broadcast mul-add (no K=1 matmul);
    # dropout_p=0 -> dropout is a no-op.
    h1 = jnp.dot(x, w1x, preferred_element_type=f32)
    h1 = jnp.tanh(h1 + lab * w1y + b1)

    # ---- fused latent heads: [z_mean | z_logvar] = h1 @ Wmv + bmv ----------
    zz = jnp.dot(h1, wmv, preferred_element_type=f32) + bmv
    z_mean = zz[:, 0:Z]
    z_logvar = zz[:, Z:2 * Z]

    # ---- reparameterization: z = mean + eps * exp(0.5*logvar) --------------
    z = z_mean + eps * jnp.exp(0.5 * z_logvar)

    # ---- decoder: h2 = tanh(Linear(cat(z, label))) -------------------------
    h2 = jnp.dot(z, w2z, preferred_element_type=f32)
    h2 = jnp.tanh(h2 + lab * w2y + b2)

    # ---- gen_x_mean: sigmoid(Linear(h2)) (data_mode='mask') ----------------
    logits = jnp.dot(h2, wg, preferred_element_type=f32) + bg
    o_ref[...] = jax.nn.sigmoid(logits)


# ------------------------------ params / packing -----------------------------
def _linear_params(key, fan_in, fan_out):
    """Deterministic PyTorch-style nn.Linear init: U(-1/sqrt(fan_in), +)."""
    kw, kb = jax.random.split(key)
    bound = 1.0 / float(fan_in) ** 0.5
    w = jax.random.uniform(kw, (fan_out, fan_in), jnp.float32, -bound, bound)
    b = jax.random.uniform(kb, (fan_out,), jnp.float32, -bound, bound)
    return w, b


def init_vae_params(key, x_dim, seq_len, z_dim, h_enc, h_dec):
    dx = x_dim * seq_len
    keys = jax.random.split(key, 5)
    p = {}
    p["w1"], p["b1"] = _linear_params(keys[0], dx + 1, h_enc)      # mlp_x_z.linear0
    p["wm"], p["bm"] = _linear_params(keys[1], h_enc, z_dim)       # z_mean
    p["wv"], p["bv"] = _linear_params(keys[2], h_enc, z_dim)       # z_logvar
    p["w2"], p["b2"] = _linear_params(keys[3], z_dim + 1, h_dec)   # mlp_z_x.linear0
    p["wg"], p["bg"] = _linear_params(keys[4], h_dec, dx)          # gen_x_mean
    return p


def pack_vae_params(params, x_dim, seq_len, slab_dtype=jnp.float32):
    """One-time packing: split/transpose/fuse all 13 weight & bias tensors into
    a single lane-packed (rows, 128) slab so the kernel receives ONE parameter
    input.  The NCL->time-major input permute and time-major->NCL output
    permute of VAE.forward are folded into the w1x rows and gen_x_mean
    columns/bias here, so the per-forward wrapper never transposes data."""
    dx = x_dim * seq_len
    H1 = params["w1"].shape[0]
    Z = params["wm"].shape[0]
    H2 = params["w2"].shape[0]

    # idx[c*seq_len + t] = t*x_dim + c  (NCL-flat index -> time-major-flat index)
    idx = jnp.arange(dx).reshape(seq_len, x_dim).T.reshape(-1)

    w1xT = params["w1"][:, :dx].T[idx, :]                             # (Dx, H1), rows in NCL order
    w1y = params["w1"][:, dx:].T                                      # (1, H1)   label column
    wmvT = jnp.concatenate([params["wm"].T, params["wv"].T], axis=1)  # (H1, 2Z)
    bmv = jnp.concatenate([params["bm"], params["bv"]]).reshape(1, 2 * Z)
    w2zT = params["w2"][:, :Z].T                                      # (Z, H2)
    w2y = params["w2"][:, Z:].T                                       # (1, H2)   label column
    wgT = params["wg"].T[:, idx]                                      # (H2, Dx), cols in NCL order
    bg = params["bg"][idx].reshape(1, dx)

    mats = [w1xT, wmvT, w2zT, wgT]
    widths = [H1, 2 * Z, H2, dx]
    lanes, off = [], 0
    for w in widths:
        lanes.append(off)
        off += w
    assert off <= 128, (
        f"lane-packed slab needs {off} lanes > 128; this dense_x_z/dense_z_x "
        f"config requires falling back to row-stacked packing")

    vrow = _round8(max(m.shape[0] for m in mats))     # vec block row start (8-aligned)
    W = 128                                           # one full f32 tile width
    slab = jnp.zeros((vrow + 8, W), jnp.float32)
    for m, lo in zip(mats, lanes):
        r, c = m.shape
        slab = slab.at[0:r, lo:lo + c].set(m.astype(jnp.float32))
    vec_rows = [(w1y, lanes[0]),
                (params["b1"].reshape(1, -1), lanes[0]),
                (bmv, lanes[1]),
                (w2y, lanes[2]),
                (params["b2"].reshape(1, -1), lanes[2]),
                (bg, lanes[3])]
    for i, (v, lo) in enumerate(vec_rows):
        slab = slab.at[vrow + i:vrow + i + 1, lo:lo + v.shape[1]].set(
            v.astype(jnp.float32))

    return {"slab": slab.astype(slab_dtype),      # bf16 toggle for v6e/v7x DMA halving
            "lanes": tuple(lanes),
            "vrow": int(vrow),
            "dims": (dx, H1, Z, H2)}


# ------------------------------ glue / wrapper -------------------------------
def make_vae_forward(packed, x_dim, seq_len):
    """Build the forward ONCE (kernel closure + jit).  Returns
    fwd(x, labels, eps, slab) -> x_hat of shape (1, x_dim, seq_len),
    replicating VAE.forward(x, labels, compute_loss=False) for the config above."""
    dims = packed["dims"]
    dx, H1, Z, H2 = dims
    kernel = functools.partial(vae_forward_kernel, dims=dims,
                               lanes=packed["lanes"], vrow=packed["vrow"])
    vmem = pl.BlockSpec(memory_space=pltpu.MemorySpace.VMEM)

    def fwd(x, labels, eps, slab):
        B = x.shape[0]
        # PyTorch does x.permute(0,2,1).reshape(B,-1); the permute is folded
        # into w1x's rows, so only a free NCL flatten is needed here.
        x_ncl = x.reshape(B, dx).astype(jnp.float32)
        lab = labels[:, :, 0].astype(jnp.float32)                     # (B, 1)
        # Single packed activation input: [ x | eps | label ].
        acts = jnp.concatenate([x_ncl, eps.astype(jnp.float32), lab], axis=1)

        flops = 2 * B * (dx * H1 + H1 * 2 * Z + Z * H2 + H2 * dx) \
            + 10 * B * (H1 + Z + H2 + dx)
        transc = B * (H1 + Z + H2 + dx)              # tanh, exp, tanh, sigmoid
        nbytes = 4 * (acts.size + int(slab.size) + B * dx)
        cost = pl.CostEstimate(flops=int(flops), transcendentals=int(transc),
                               bytes_accessed=int(nbytes))

        x_mean_ncl = pl.pallas_call(
            kernel,
            out_shape=jax.ShapeDtypeStruct((B, dx), jnp.float32),
            in_specs=[vmem, vmem],
            out_specs=vmem,
            cost_estimate=cost,
        )(acts, slab)

        # Exact PyTorch forward tail for encoder='mlp', data_mode='mask':
        #   x_hat = [reshape(row, (-1, seq_len, x_dim)) for row in x_mean]  (iterates batch rows)
        #   x_hat = [r.permute(0, 2, 1) for r in x_hat];  return x_hat[0]
        # The permute is pre-folded into gen_x_mean's columns, so row 0 is
        # already in (x_dim, seq_len) element order -> a free reshape suffices.
        return x_mean_ncl[0].reshape(1, x_dim, seq_len)

    return jax.jit(fwd)


def vae_forward_ref(x, labels, eps, params, x_dim, seq_len):
    """Pure-JAX reference of the same forward pass (for correctness check)."""
    B = x.shape[0]
    dx = x_dim * seq_len
    x_flat = jnp.transpose(x, (0, 2, 1)).reshape(B, dx).astype(jnp.float32)
    lab = labels[:, :, 0].astype(jnp.float32)
    x_cat = jnp.concatenate([x_flat, lab], axis=1)
    h1 = jnp.tanh(x_cat @ params["w1"].T + params["b1"])
    z_mean = h1 @ params["wm"].T + params["bm"]
    z_logvar = h1 @ params["wv"].T + params["bv"]
    z = z_mean + eps * jnp.exp(0.5 * z_logvar)
    z_cat = jnp.concatenate([z, lab], axis=1)
    h2 = jnp.tanh(z_cat @ params["w2"].T + params["b2"])
    x_mean = jax.nn.sigmoid(h2 @ params["wg"].T + params["bg"])
    return jnp.transpose(x_mean[0].reshape(1, seq_len, x_dim), (0, 2, 1))


if __name__ == "__main__":
    # small shapes consistent with the module
    B, x_dim, seq_len, z_dim = 2, 4, 8, 16
    h_enc, h_dec = 32, 32     # dense_x_z=[32], dense_z_x=[32]

    key = jax.random.PRNGKey(0)
    k_x, k_lab, k_eps, k_param = jax.random.split(key, 4)

    x = jax.random.normal(k_x, (B, x_dim, seq_len), jnp.float32)          # NCL, like PyTorch
    labels = jax.random.bernoulli(k_lab, 0.5, (B, 1, seq_len)).astype(jnp.float32)
    eps = jax.random.normal(k_eps, (B, z_dim), jnp.float32)               # reparam noise (torch.randn_like)
    params = init_vae_params(k_param, x_dim, seq_len, z_dim, h_enc, h_dec)

    packed = pack_vae_params(params, x_dim, seq_len)          # one-time packing
    vae_forward = make_vae_forward(packed, x_dim, seq_len)    # one-time build + jit

    out = vae_forward(x, labels, eps, packed["slab"])
    out = jax.block_until_ready(out)

    ref = vae_forward_ref(x, labels, eps, params, x_dim, seq_len)
    assert out.shape == (1, x_dim, seq_len), out.shape
    assert jnp.allclose(out, ref, rtol=1e-5, atol=1e-5), float(jnp.max(jnp.abs(out - ref)))

    # TODO(synk): get_loss (BCE recon + KLD) path not implemented; forward is run
    # with compute_loss=False, which does not change the returned tensor.
    print("KERNEL_OK")
</pallas_src>

<mosaic_0001>
module attributes {stable_mosaic.version = 11 : i64} {
  func.func @vae_forward_kernel(%arg0: memref<2x49xf32, #tpu.memory_space<vmem>>, %arg1: memref<40x128xf32, #tpu.memory_space<vmem>>, %arg2: memref<2x32xf32, #tpu.memory_space<vmem>>) attributes {dimension_semantics = [], scalar_prefetch = 0 : i64, scratch_operands = 0 : i64, tpu.core_type = #tpu.core_type<tc>} {
    %c0 = arith.constant 0 : index
    %c0_0 = arith.constant 0 : index
    %0 = vector.load %arg0[%c0, %c0_0] : memref<2x49xf32, #tpu.memory_space<vmem>>, vector<2x49xf32>
    %1 = vector.extract_strided_slice %0 {offsets = [0, 0], sizes = [2, 32], strides = [1, 1]} : vector<2x49xf32> to vector<2x32xf32>
    %2 = vector.extract_strided_slice %0 {offsets = [0, 32], sizes = [2, 16], strides = [1, 1]} : vector<2x49xf32> to vector<2x16xf32>
    %3 = vector.extract_strided_slice %0 {offsets = [0, 48], sizes = [2, 1], strides = [1, 1]} : vector<2x49xf32> to vector<2x1xf32>
    %c0_1 = arith.constant 0 : index
    %c0_2 = arith.constant 0 : index
    %4 = vector.load %arg1[%c0_1, %c0_2] : memref<40x128xf32, #tpu.memory_space<vmem>>, vector<32x32xf32>
    %c0_3 = arith.constant 0 : index
    %c32 = arith.constant 32 : index
    %5 = vector.load %arg1[%c0_3, %c32] : memref<40x128xf32, #tpu.memory_space<vmem>>, vector<32x32xf32>
    %c0_4 = arith.constant 0 : index
    %c64 = arith.constant 64 : index
    %6 = vector.load %arg1[%c0_4, %c64] : memref<40x128xf32, #tpu.memory_space<vmem>>, vector<16x32xf32>
    %c0_5 = arith.constant 0 : index
    %c96 = arith.constant 96 : index
    %7 = vector.load %arg1[%c0_5, %c96] : memref<40x128xf32, #tpu.memory_space<vmem>>, vector<32x32xf32>
    %c32_6 = arith.constant 32 : index
    %c0_7 = arith.constant 0 : index
    %8 = vector.load %arg1[%c32_6, %c0_7] : memref<40x128xf32, #tpu.memory_space<vmem>>, vector<1x32xf32>
    %c33 = arith.constant 33 : index
    %c0_8 = arith.constant 0 : index
    %9 = vector.load %arg1[%c33, %c0_8] : memref<40x128xf32, #tpu.memory_space<vmem>>, vector<1x32xf32>
    %c34 = arith.constant 34 : index
    %c32_9 = arith.constant 32 : index
    %10 = vector.load %arg1[%c34, %c32_9] : memref<40x128xf32, #tpu.memory_space<vmem>>, vector<1x32xf32>
    %c35 = arith.constant 35 : index
    %c64_10 = arith.constant 64 : index
    %11 = vector.load %arg1[%c35, %c64_10] : memref<40x128xf32, #tpu.memory_space<vmem>>, vector<1x32xf32>
    %c36 = arith.constant 36 : index
    %c64_11 = arith.constant 64 : index
    %12 = vector.load %arg1[%c36, %c64_11] : memref<40x128xf32, #tpu.memory_space<vmem>>, vector<1x32xf32>
    %c37 = arith.constant 37 : index
    %c96_12 = arith.constant 96 : index
    %13 = vector.load %arg1[%c37, %c96_12] : memref<40x128xf32, #tpu.memory_space<vmem>>, vector<1x32xf32>
    %cst = arith.constant dense<0.000000e+00> : vector<2x32xf32>
    %14 = tpu.matmul %1, %4, %cst {dimension_numbers = #tpu.dot_dimension_numbers<[1], [0], [0], [1], [0, 0, 1, 1], [], []>} : vector<2x32xf32>, vector<32x32xf32>, vector<2x32xf32> -> vector<2x32xf32>
    %15 = vector.broadcast %3 : vector<2x1xf32> to vector<2x32xf32>
    %16 = vector.broadcast %8 : vector<1x32xf32> to vector<2x32xf32>
    %17 = arith.mulf %15, %16 : vector<2x32xf32>
    %18 = arith.addf %14, %17 : vector<2x32xf32>
    %19 = vector.broadcast %9 : vector<1x32xf32> to vector<2x32xf32>
    %20 = arith.addf %18, %19 : vector<2x32xf32>
    %21 = math.tanh %20 : vector<2x32xf32>
    %cst_13 = arith.constant dense<0.000000e+00> : vector<2x32xf32>
    %22 = tpu.matmul %21, %5, %cst_13 {dimension_numbers = #tpu.dot_dimension_numbers<[1], [0], [0], [1], [0, 0, 1, 1], [], []>} : vector<2x32xf32>, vector<32x32xf32>, vector<2x32xf32> -> vector<2x32xf32>
    %23 = vector.broadcast %10 : vector<1x32xf32> to vector<2x32xf32>
    %24 = arith.addf %22, %23 : vector<2x32xf32>
    %25 = vector.extract_strided_slice %24 {offsets = [0, 0], sizes = [2, 16], strides = [1, 1]} : vector<2x32xf32> to vector<2x16xf32>
    %26 = vector.extract_strided_slice %24 {offsets = [0, 16], sizes = [2, 16], strides = [1, 1]} : vector<2x32xf32> to vector<2x16xf32>
    %cst_14 = arith.constant 5.000000e-01 : f32
    %27 = vector.broadcast %cst_14 : f32 to vector<2x16xf32>
    %28 = arith.mulf %27, %26 : vector<2x16xf32>
    %29 = math.exp %28 : vector<2x16xf32>
    %30 = arith.mulf %2, %29 : vector<2x16xf32>
    %31 = arith.addf %25, %30 : vector<2x16xf32>
    %cst_15 = arith.constant dense<0.000000e+00> : vector<2x32xf32>
    %32 = tpu.matmul %31, %6, %cst_15 {dimension_numbers = #tpu.dot_dimension_numbers<[1], [0], [0], [1], [0, 0, 1, 1], [], []>} : vector<2x16xf32>, vector<16x32xf32>, vector<2x32xf32> -> vector<2x32xf32>
    %33 = vector.broadcast %3 : vector<2x1xf32> to vector<2x32xf32>
    %34 = vector.broadcast %11 : vector<1x32xf32> to vector<2x32xf32>
    %35 = arith.mulf %33, %34 : vector<2x32xf32>
    %36 = arith.addf %32, %35 : vector<2x32xf32>
    %37 = vector.broadcast %12 : vector<1x32xf32> to vector<2x32xf32>
    %38 = arith.addf %36, %37 : vector<2x32xf32>
    %39 = math.tanh %38 : vector<2x32xf32>
    %cst_16 = arith.constant dense<0.000000e+00> : vector<2x32xf32>
    %40 = tpu.matmul %39, %7, %cst_16 {dimension_numbers = #tpu.dot_dimension_numbers<[1], [0], [0], [1], [0, 0, 1, 1], [], []>} : vector<2x32xf32>, vector<32x32xf32>, vector<2x32xf32> -> vector<2x32xf32>
    %41 = vector.broadcast %13 : vector<1x32xf32> to vector<2x32xf32>
    %42 = arith.addf %40, %41 : vector<2x32xf32>
    %43 = arith.negf %42 : vector<2x32xf32>
    %44 = math.exp %43 : vector<2x32xf32>
    %cst_17 = arith.constant 1.000000e+00 : f32
    %45 = vector.broadcast %cst_17 : f32 to vector<2x32xf32>
    %46 = arith.addf %45, %44 : vector<2x32xf32>
    %47 = arith.divf %45, %46 : vector<2x32xf32>
    %c0_18 = arith.constant 0 : index
    %c0_19 = arith.constant 0 : index
    %48 = vector.load %arg2[%c0_18, %c0_19] : memref<2x32xf32, #tpu.memory_space<vmem>>, vector<2x32xf32>
    tpu.vector_store %arg2[%c0_18, %c0_19], %47 {strides = array<i32>} : memref<2x32xf32, #tpu.memory_space<vmem>>, vector<2x32xf32>,
    return
  }
}

</mosaic_0001>

<llo_original>
// kernel: squeeze.3
$region0: #{squeeze.3}
  %s0 = inlined_call_operand.vmem [shape: f32[32], index: 0, kind: input, shape index: {}]
  %s1 = inlined_call_operand.hbm [shape: f32[1,4,8], index: 1, kind: output, shape index: {}]
  $region1: #{squeeze.3} parent=0
    #allocation0 [shape = 'u8[2048]{0}', space=vmem, size = 0x800, scoped, tag = 'operand span for operand 1']
    #allocation1 [shape = 's32[1]{0}', space=sflag, size = 0x4, scoped, tag = 'scoped memory for squeeze.3']
    #allocation2 [shape = 'u8[4096]{0}', space=vmem, size = 0x1000, scoped, tag = 'scoped mem for output reshape']
    #allocation3 [shape = 'u8[4096]{0}', space=vmem, size = 0x1000, scoped, tag = 'scoped mem for input reshape']
    %2 = vsyncpa [#allocation1], 0
    %s4 = sshllo.u32 0, 1
    %v5 = vld [vmem:[%s0] sm:%s4]
    %6 = vst [vmem:[#allocation3] sm:%s4] %v5
    %v7 = vld [vmem:[#allocation3] sm:$0x1]
    %vm8 = vcmask 64512
    %9 = vst.msk [vmem:[#allocation2] sm:$0x1] %vm8, %v7
    %v10 = vld [vmem:[#allocation3] sm:$0x1]
    %11 = vrot.lane.b32.xlu0 %v10, 120
    %v12 = vpop.permute.xlu0 %11
    %vm13 = vcmask 64512
    %s14 = scalar_lea.vmem [#allocation2], 1
    %15 = vst.msk [vmem:[%s14] sm:$0x1] %vm13, %v12
    %v16 = vld [vmem:[#allocation3] sm:$0x1]
    %17 = vrot.lane.b32.xlu0 %v16, 112
    %v18 = vpop.permute.xlu0 %17
    %vm19 = vcmask 64512
    %s20 = scalar_lea.vmem [#allocation2], 2
    %21 = vst.msk [vmem:[%s20] sm:$0x1] %vm19, %v18
    %v22 = vld [vmem:[#allocation3] sm:$0x1]
    %23 = vrot.lane.b32.xlu0 %v22, 104
    %v24 = vpop.permute.xlu0 %23
    %vm25 = vcmask 64512
    %s26 = scalar_lea.vmem [#allocation2], 3
    %27 = vst.msk [vmem:[%s26] sm:$0x1] %vm25, %v24
    %s29 = sshllo.u32 0, 4
    %v31 = vld [vmem:[#allocation2] sm:%s29]
    %s32 = sshllo.u32 0, 4
    %33 = vst [vmem:[#allocation0] sm:%s32] %v31
    %s35 = ssub.s32 64, 64
    %36 = vsyncadd [#allocation1], %s35
    %s38 = sshll.u32 [#allocation0], 4
    %s39 = int_to_ptr.vmem [resolvable:$true] %s38
    %41 = dma.vmem_to_hbm [thread:$0]  %s39, 64, %s1, [#allocation1]
    %42 = dma.done [#allocation1], 64
    %43 = vsyncpa [#allocation1], 1

// kernel: fwd.1
$region0: #{fwd.1}
  #allocation0 [shape = 'u32[]', space=smem, size = 0x4, offset = 0x4, fixed_abs, tag = 'smem constant byte address 0x4 - core index']
  #allocation1 [shape = 'u32[144,128]{1,0:T(1,128)}', space=vmem, size = 0x12000, scoped, tag = 'internal scratch']
  %s0 = inlined_call_operand.vmem [shape: f32[2,49], index: 0, kind: input, shape index: {}]
  %s1 = inlined_call_operand.hbm [shape: f32[40,128], index: 1, kind: input, shape index: {}]
  %s2 = inlined_call_operand.vmem [shape: f32[2,32], index: 2, kind: output, shape index: {}]
  %s3 = sld [smem:[#allocation0]]
  $region22: #{fwd.1} parent=0
    _
  %s5 = ssub.s32 1, %s3
  %s6 = scalar_select 0, %s5, %s3
  $region1: #{fwd.1} parent=0
    #allocation2 [shape = 'u8[20480]{0}', space=vmem, size = 0x5000, scoped, tag = 'input window, operand 1, single buffered']
    #allocation3 [shape = 's32[1]{0}', space=sflag, size = 0x4, scoped, tag = 'scoped memory for fwd.1']
    %7 = vsyncpa [#allocation3], 0
    // Predicated region
    $region2: #{fwd.1} parent=1 // pred_check
      _
    $region3: #{fwd.1} parent=1 // pred_check_branch
      %9 = sbr.rel (0) target = $region5
    $region4: #{fwd.1} parent=1 // pred_region
      _
    $region5: #{fwd.1} parent=1 // pred_fallthru
      _
    // Predicated region
    $region6: #{fwd.1} parent=1 // pred_check
      _
    $region7: #{fwd.1} parent=1 // pred_check_branch
      %11 = sbr.rel (0) target = $region9
    $region8: #{fwd.1} parent=1 // pred_region
      %s13 = ssub.s32 640, 640
      %14 = vsyncadd [#allocation3], %s13
      %s15 = sshll.u32 [#allocation2], 4
      %s16 = int_to_ptr.vmem [resolvable:$true] %s15
      %21 = dma.hbm_to_vmem [thread:$0]  %s1, 640, %s16, [#allocation3], 128, 128, 8
    $region9: #{fwd.1} parent=1 // pred_fallthru
      _
    // Predicated region
    $region10: #{fwd.1} parent=1 // pred_check
      _
    $region11: #{fwd.1} parent=1 // pred_check_branch
      %23 = sbr.rel (0) target = $region13
    $region12: #{fwd.1} parent=1 // pred_region
      %24 = dma.done [#allocation3], 640
    $region13: #{fwd.1} parent=1 // pred_fallthru
      _
    %v25 = vld [vmem:[%s0] sm:$0x3]
    %v26 = vld [vmem:[#allocation2] sm:$0xff]
    %v27 = vld [vmem:[#allocation2 + $0x8] sm:$0xff]
    %v28 = vld [vmem:[#allocation2 + $0x10] sm:$0xff]
    %v29 = vld [vmem:[#allocation2 + $0x18] sm:$0xff]
    %v30 = vld [vmem:[#allocation2 + $0x20] sm:$0x1]
    %v31 = vld [vmem:[#allocation2 + $0x21] sm:$0x1]
    %v32 = vld [vmem:[#allocation2 + $0x22] sm:$0x1]
    %v33 = vld [vmem:[#allocation2 + $0x23] sm:$0x1]
    %v34 = vld [vmem:[#allocation2 + $0x24] sm:$0x1]
    %v35 = vld [vmem:[#allocation2 + $0x25] sm:$0x1]
    %37 = vset.pattern.permute.xlu0 48
    %38 = vperm.xlu0 %37, %v25
    %v39 = vpop.permute.xlu0 %38
    %v41 = vlaneseq
    %v42 = vshrl.u32 %v41, 7
    %v43 = vsub.s32 0, %v42
    %v44 = vrot.slane %v30, %v43
    %v45 = vmul.f32 %v39, %v44
    %vm46 = vcmask 261120
    %v47 = vsel %vm46, %v25, 0
    %49 = vmatprep.subr.mxu0 0.0
    %50 = vmatpush1.msra.mxu0 %v26
    %51 = vmatprep.subr.mxu0 0.0
    %52 = vmatpush1.msra.mxu0 %v27
    %53 = vmatprep.subr.mxu0 0.0
    %54 = vmatpush1.msra.mxu0 %v28
    %55 = vmatprep.subr.mxu0 0.0
    %56 = vmatpush1.msra.mxu0 %v29
    %57 = vmatprep.subr.mxu0 0.0
    %58 = vmatpush1.msra.mxu0 0.0
    %59 = vmatprep.subr.mxu0 0.0
    %60 = vmatpush1.msra.mxu0 0.0
    %61 = vmatprep.subr.mxu0 0.0
    %62 = vmatpush1.msra.mxu0 0.0
    %63 = vmatprep.subr.mxu0 0.0
    %64 = vmatpush1.msra.mxu0 0.0
    %65 = vmatprep.subr.mxu0 0.0
    %66 = vmatpush1.msra.mxu0 0.0
    %67 = vmatprep.subr.mxu0 0.0
    %68 = vmatpush1.msra.mxu0 0.0
    %69 = vmatprep.subr.mxu0 0.0
    %70 = vmatpush1.msra.mxu0 0.0
    %71 = vmatprep.subr.mxu0 0.0
    %72 = vmatpush1.msra.mxu0 0.0
    %73 = vmatprep.subr.mxu0 0.0
    %74 = vmatpush1.msra.mxu0 0.0
    %75 = vmatprep.subr.mxu0 0.0
    %76 = vmatpush1.msra.mxu0 0.0
    %77 = vmatprep.subr.mxu0 0.0
    %78 = vmatpush1.msra.mxu0 0.0
    %79 = vmatprep.subr.mxu0 0.0
    %80 = vmatpush1.msra.mxu0 0.0
    %81 = vmatprep.subr.mxu0 0.0
    %82 = vmatpush1.msra.mxu0 0.0
    %83 = vmatprep.subr.mxu0 0.0
    %84 = vmatpush1.msra.mxu0 0.0
    %85 = vmatprep.subr.mxu0 0.0
    %86 = vmatpush1.msra.mxu0 0.0
    %87 = vmatprep.subr.mxu0 0.0
    %88 = vmatpush1.msra.mxu0 0.0
    %89 = vmatprep.subr.mxu0 0.0
    %90 = vmatpush1.msra.mxu0 0.0
    %91 = vmatprep.subr.mxu0 0.0
    %92 = vmatpush1.msra.mxu0 0.0
    %93 = vmatprep.subr.mxu0 0.0
    %94 = vmatpush1.msra.mxu0 0.0
    %95 = vmatprep.subr.mxu0 0.0
    %96 = vmatpush1.msra.mxu0 0.0
    %97 = vmatprep.subr.mxu0 0.0
    %98 = vmatpush1.msra.mxu0 0.0
    %99 = vmatprep.subr.mxu0 0.0
    %100 = vmatpush1.msra.mxu0 0.0
    %101 = vmatprep.subr.mxu0 0.0
    %102 = vmatpush1.msra.mxu0 0.0
    %103 = vmatprep.subr.mxu0 0.0
    %104 = vmatpush1.msra.mxu0 0.0
    %105 = vmatprep.subr.mxu0 0.0
    %106 = vmatpush1.msra.mxu0 0.0
    %107 = vmatprep.subr.mxu0 0.0
    %108 = vmatpush1.msra.mxu0 0.0
    %109 = vmatprep.subr.mxu0 0.0
    %110 = vmatpush1.msra.mxu0 0.0
    %111 = vmatprep.subr.mxu0 0.0
    %112 = vmatpush1.msra.mxu0 0.0
    %113 = vmatprep.mubr.f32.mxu0 0.0
    %114 = vmatmul.mubr.f32.gmra.mrb[0].mxu0 %v47
    %v115 = vpop.f32.mrb[0].mxu0
    %v116 = vadd.f32 %v45, %v115
    %v117 = vpop.f32.mrb[0].mxu0
    %118 = vdwg.mxu0
    %v119 = vlaneseq
    %v120 = vshrl.u32 %v119, 7
    %v121 = vsub.s32 0, %v120
    %v122 = vrot.slane %v31, %v121
    %v123 = vadd.f32 %v116, %v122
    %v124 = vtanh.pop %v123
    %v125 = vlaneseq
    %v126 = vshrl.u32 %v125, 7
    %v127 = vsub.s32 0, %v126
    %v128 = vrot.slane %v32, %v127
    %133 = vrot.lane.b32.xlu0 %v26, 96
    %v134 = vpop.permute.xlu0 %133
    %135 = vrot.lane.b32.xlu0 %v27, 96
    %v136 = vpop.permute.xlu0 %135
    %137 = vrot.lane.b32.xlu0 %v28, 96
    %v138 = vpop.permute.xlu0 %137
    %139 = vrot.lane.b32.xlu0 %v29, 96
    %v140 = vpop.permute.xlu0 %139
    %146 = vrot.lane.b32.xlu0 %v128, 96
    %v147 = vpop.permute.xlu0 %146
    %v150 = vsel %vm46, %v124, 0
    %152 = vmatprep.subr.mxu0 0.0
    %153 = vmatpush1.msra.mxu0 %v134
    %154 = vmatprep.subr.mxu0 0.0
    %155 = vmatpush1.msra.mxu0 %v136
    %156 = vmatprep.subr.mxu0 0.0
    %157 = vmatpush1.msra.mxu0 %v138
    %158 = vmatprep.subr.mxu0 0.0
    %159 = vmatpush1.msra.mxu0 %v140
    %160 = vmatprep.subr.mxu0 0.0
    %161 = vmatpush1.msra.mxu0 0.0
    %162 = vmatprep.subr.mxu0 0.0
    %163 = vmatpush1.msra.mxu0 0.0
    %164 = vmatprep.subr.mxu0 0.0
    %165 = vmatpush1.msra.mxu0 0.0
    %166 = vmatprep.subr.mxu0 0.0
    %167 = vmatpush1.msra.mxu0 0.0
    %168 = vmatprep.subr.mxu0 0.0
    %169 = vmatpush1.msra.mxu0 0.0
    %170 = vmatprep.subr.mxu0 0.0
    %171 = vmatpush1.msra.mxu0 0.0
    %172 = vmatprep.subr.mxu0 0.0
    %173 = vmatpush1.msra.mxu0 0.0
    %174 = vmatprep.subr.mxu0 0.0
    %175 = vmatpush1.msra.mxu0 0.0
    %176 = vmatprep.subr.mxu0 0.0
    %177 = vmatpush1.msra.mxu0 0.0
    %178 = vmatprep.subr.mxu0 0.0
    %179 = vmatpush1.msra.mxu0 0.0
    %180 = vmatprep.subr.mxu0 0.0
    %181 = vmatpush1.msra.mxu0 0.0
    %182 = vmatprep.subr.mxu0 0.0
    %183 = vmatpush1.msra.mxu0 0.0
    %184 = vmatprep.subr.mxu0 0.0
    %185 = vmatpush1.msra.mxu0 0.0
    %186 = vmatprep.subr.mxu0 0.0
    %187 = vmatpush1.msra.mxu0 0.0
    %188 = vmatprep.subr.mxu0 0.0
    %189 = vmatpush1.msra.mxu0 0.0
    %190 = vmatprep.subr.mxu0 0.0
    %191 = vmatpush1.msra.mxu0 0.0
    %192 = vmatprep.subr.mxu0 0.0
    %193 = vmatpush1.msra.mxu0 0.0
    %194 = vmatprep.subr.mxu0 0.0
    %195 = vmatpush1.msra.mxu0 0.0
    %196 = vmatprep.subr.mxu0 0.0
    %197 = vmatpush1.msra.mxu0 0.0
    %198 = vmatprep.subr.mxu0 0.0
    %199 = vmatpush1.msra.mxu0 0.0
    %200 = vmatprep.subr.mxu0 0.0
    %201 = vmatpush1.msra.mxu0 0.0
    %202 = vmatprep.subr.mxu0 0.0
    %203 = vmatpush1.msra.mxu0 0.0
    %204 = vmatprep.subr.mxu0 0.0
    %205 = vmatpush1.msra.mxu0 0.0
    %206 = vmatprep.subr.mxu0 0.0
    %207 = vmatpush1.msra.mxu0 0.0
    %208 = vmatprep.subr.mxu0 0.0
    %209 = vmatpush1.msra.mxu0 0.0
    %210 = vmatprep.subr.mxu0 0.0
    %211 = vmatpush1.msra.mxu0 0.0
    %212 = vmatprep.subr.mxu0 0.0
    %213 = vmatpush1.msra.mxu0 0.0
    %214 = vmatprep.subr.mxu0 0.0
    %215 = vmatpush1.msra.mxu0 0.0
    %216 = vmatprep.mubr.f32.mxu0 0.0
    %217 = vmatmul.mubr.f32.gmra.mrb[0].mxu0 %v150
    %v218 = vpop.f32.mrb[0].mxu0
    %v219 = vadd.f32 %v147, %v218
    %v220 = vpop.f32.mrb[0].mxu0
    %221 = vdwg.mxu0
    %v222 = vmul.f32 %v219, 0.5
    %v223 = vmul.f32 %v222, 1.442695
    %v224 = vpow.pop %v223
    %226 = vrot.lane.b32.xlu0 %v224, 16
    %v227 = vpop.permute.xlu0 %226
    %v229 = vmul.f32 %v25, %v227
    %231 = vrot.lane.b32.xlu0 %v229, 96
    %v232 = vpop.permute.xlu0 %231
    %v234 = vadd.f32 %v219, %v232
    %v235 = vlaneseq
    %v236 = vshrl.u32 %v235, 7
    %v237 = vsub.s32 0, %v236
    %v238 = vrot.slane %v33, %v237
    %v239 = vmul.f32 %v39, %v238
    %240 = vrot.lane.b32.xlu0 %v26, 64
    %v241 = vpop.permute.xlu0 %240
    %242 = vrot.lane.b32.xlu0 %v27, 64
    %v243 = vpop.permute.xlu0 %242
    %247 = vrot.lane.b32.xlu0 %v239, 64
    %v248 = vpop.permute.xlu0 %247
    %vm250 = vcmask 130048
    %v252 = vsel %vm250, %v234, 0
    %254 = vmatprep.subr.mxu0 0.0
    %255 = vmatpush1.msra.mxu0 %v241
    %256 = vmatprep.subr.mxu0 0.0
    %257 = vmatpush1.msra.mxu0 %v243
    %258 = vmatprep.subr.mxu0 0.0
    %259 = vmatpush1.msra.mxu0 0.0
    %260 = vmatprep.subr.mxu0 0.0
    %261 = vmatpush1.msra.mxu0 0.0
    %262 = vmatprep.subr.mxu0 0.0
    %263 = vmatpush1.msra.mxu0 0.0
    %264 = vmatprep.subr.mxu0 0.0
    %265 = vmatpush1.msra.mxu0 0.0
    %266 = vmatprep.subr.mxu0 0.0
    %267 = vmatpush1.msra.mxu0 0.0
    %268 = vmatprep.subr.mxu0 0.0
    %269 = vmatpush1.msra.mxu0 0.0
    %270 = vmatprep.subr.mxu0 0.0
    %271 = vmatpush1.msra.mxu0 0.0
    %272 = vmatprep.subr.mxu0 0.0
    %273 = vmatpush1.msra.mxu0 0.0
    %274 = vmatprep.subr.mxu0 0.0
    %275 = vmatpush1.msra.mxu0 0.0
    %276 = vmatprep.subr.mxu0 0.0
    %277 = vmatpush1.msra.mxu0 0.0
    %278 = vmatprep.subr.mxu0 0.0
    %279 = vmatpush1.msra.mxu0 0.0
    %280 = vmatprep.subr.mxu0 0.0
    %281 = vmatpush1.msra.mxu0 0.0
    %282 = vmatprep.subr.mxu0 0.0
    %283 = vmatpush1.msra.mxu0 0.0
    %284 = vmatprep.subr.mxu0 0.0
    %285 = vmatpush1.msra.mxu0 0.0
    %286 = vmatprep.subr.mxu0 0.0
    %287 = vmatpush1.msra.mxu0 0.0
    %288 = vmatprep.subr.mxu0 0.0
    %289 = vmatpush1.msra.mxu0 0.0
    %290 = vmatprep.subr.mxu0 0.0
    %291 = vmatpush1.msra.mxu0 0.0
    %292 = vmatprep.subr.mxu0 0.0
    %293 = vmatpush1.msra.mxu0 0.0
    %294 = vmatprep.subr.mxu0 0.0
    %295 = vmatpush1.msra.mxu0 0.0
    %296 = vmatprep.subr.mxu0 0.0
    %297 = vmatpush1.msra.mxu0 0.0
    %298 = vmatprep.subr.mxu0 0.0
    %299 = vmatpush1.msra.mxu0 0.0
    %300 = vmatprep.subr.mxu0 0.0
    %301 = vmatpush1.msra.mxu0 0.0
    %302 = vmatprep.subr.mxu0 0.0
    %303 = vmatpush1.msra.mxu0 0.0
    %304 = vmatprep.subr.mxu0 0.0
    %305 = vmatpush1.msra.mxu0 0.0
    %306 = vmatprep.subr.mxu0 0.0
    %307 = vmatpush1.msra.mxu0 0.0
    %308 = vmatprep.subr.mxu0 0.0
    %309 = vmatpush1.msra.mxu0 0.0
    %310 = vmatprep.subr.mxu0 0.0
    %311 = vmatpush1.msra.mxu0 0.0
    %312 = vmatprep.subr.mxu0 0.0
    %313 = vmatpush1.msra.mxu0 0.0
    %314 = vmatprep.subr.mxu0 0.0
    %315 = vmatpush1.msra.mxu0 0.0
    %316 = vmatprep.subr.mxu0 0.0
    %317 = vmatpush1.msra.mxu0 0.0
    %318 = vmatprep.mubr.f32.mxu0 0.0
    %319 = vmatmul.mubr.f32.gmra.mrb[0].mxu0 %v252
    %v320 = vpop.f32.mrb[0].mxu0
    %v321 = vadd.f32 %v248, %v320
    %v322 = vpop.f32.mrb[0].mxu0
    %323 = vdwg.mxu0
    %v324 = vlaneseq
    %v325 = vshrl.u32 %v324, 7
    %v326 = vsub.s32 0, %v325
    %v327 = vrot.slane %v34, %v326
    %329 = vrot.lane.b32.xlu0 %v327, 64
    %v330 = vpop.permute.xlu0 %329
    %v332 = vadd.f32 %v321, %v330
    %v333 = vtanh.pop %v332
    %v334 = vlaneseq
    %v335 = vshrl.u32 %v334, 7
    %v336 = vsub.s32 0, %v335
    %v337 = vrot.slane %v35, %v336
    %338 = vrot.lane.b32.xlu0 %v26, 32
    %v339 = vpop.permute.xlu0 %338
    %340 = vrot.lane.b32.xlu0 %v27, 32
    %v341 = vpop.permute.xlu0 %340
    %342 = vrot.lane.b32.xlu0 %v28, 32
    %v343 = vpop.permute.xlu0 %342
    %344 = vrot.lane.b32.xlu0 %v29, 32
    %v345 = vpop.permute.xlu0 %344
    %351 = vrot.lane.b32.xlu0 %v337, 32
    %v352 = vpop.permute.xlu0 %351
    %v355 = vsel %vm46, %v333, 0
    %357 = vmatprep.subr.mxu0 0.0
    %358 = vmatpush1.msra.mxu0 %v339
    %359 = vmatprep.subr.mxu0 0.0
    %360 = vmatpush1.msra.mxu0 %v341
    %361 = vmatprep.subr.mxu0 0.0
    %362 = vmatpush1.msra.mxu0 %v343
    %363 = vmatprep.subr.mxu0 0.0
    %364 = vmatpush1.msra.mxu0 %v345
    %365 = vmatprep.subr.mxu0 0.0
    %366 = vmatpush1.msra.mxu0 0.0
    %367 = vmatprep.subr.mxu0 0.0
    %368 = vmatpush1.msra.mxu0 0.0
    %369 = vmatprep.subr.mxu0 0.0
    %370 = vmatpush1.msra.mxu0 0.0
    %371 = vmatprep.subr.mxu0 0.0
    %372 = vmatpush1.msra.mxu0 0.0
    %373 = vmatprep.subr.mxu0 0.0
    %374 = vmatpush1.msra.mxu0 0.0
    %375 = vmatprep.subr.mxu0 0.0
    %376 = vmatpush1.msra.mxu0 0.0
    %377 = vmatprep.subr.mxu0 0.0
    %378 = vmatpush1.msra.mxu0 0.0
    %379 = vmatprep.subr.mxu0 0.0
    %380 = vmatpush1.msra.mxu0 0.0
    %381 = vmatprep.subr.mxu0 0.0
    %382 = vmatpush1.msra.mxu0 0.0
    %383 = vmatprep.subr.mxu0 0.0
    %384 = vmatpush1.msra.mxu0 0.0
    %385 = vmatprep.subr.mxu0 0.0
    %386 = vmatpush1.msra.mxu0 0.0
    %387 = vmatprep.subr.mxu0 0.0
    %388 = vmatpush1.msra.mxu0 0.0
    %389 = vmatprep.subr.mxu0 0.0
    %390 = vmatpush1.msra.mxu0 0.0
    %391 = vmatprep.subr.mxu0 0.0
    %392 = vmatpush1.msra.mxu0 0.0
    %393 = vmatprep.subr.mxu0 0.0
    %394 = vmatpush1.msra.mxu0 0.0
    %395 = vmatprep.subr.mxu0 0.0
    %396 = vmatpush1.msra.mxu0 0.0
    %397 = vmatprep.subr.mxu0 0.0
    %398 = vmatpush1.msra.mxu0 0.0
    %399 = vmatprep.subr.mxu0 0.0
    %400 = vmatpush1.msra.mxu0 0.0
    %401 = vmatprep.subr.mxu0 0.0
    %402 = vmatpush1.msra.mxu0 0.0
    %403 = vmatprep.subr.mxu0 0.0
    %404 = vmatpush1.msra.mxu0 0.0
    %405 = vmatprep.subr.mxu0 0.0
    %406 = vmatpush1.msra.mxu0 0.0
    %407 = vmatprep.subr.mxu0 0.0
    %408 = vmatpush1.msra.mxu0 0.0
    %409 = vmatprep.subr.mxu0 0.0
    %410 = vmatpush1.msra.mxu0 0.0
    %411 = vmatprep.subr.mxu0 0.0
    %412 = vmatpush1.msra.mxu0 0.0
    %413 = vmatprep.subr.mxu0 0.0
    %414 = vmatpush1.msra.mxu0 0.0
    %415 = vmatprep.subr.mxu0 0.0
    %416 = vmatpush1.msra.mxu0 0.0
    %417 = vmatprep.subr.mxu0 0.0
    %418 = vmatpush1.msra.mxu0 0.0
    %419 = vmatprep.subr.mxu0 0.0
    %420 = vmatpush1.msra.mxu0 0.0
    %421 = vmatprep.mubr.f32.mxu0 0.0
    %422 = vmatmul.mubr.f32.gmra.mrb[0].mxu0 %v355
    %v423 = vpop.f32.mrb[0].mxu0
    %v424 = vadd.f32 %v352, %v423
    %v425 = vpop.f32.mrb[0].mxu0
    %426 = vdwg.mxu0
    %v427 = vxor.u32 %v424, 2147483648
    %v428 = vmul.f32 %v427, 1.442695
    %v429 = vpow.pop %v428
    %v430 = vadd.f32 %v429, 1.0
    %v431 = vrcp.pop %v430
    %v432 = vmul.f32 1.0, %v431
    %vm433 = vcmask 254976
    %434 = vst.msk [vmem:[%s2] sm:$0x3] %vm433, %v432
    // Predicated region
    $region14: #{fwd.1} parent=1 // pred_check
      _
    $region15: #{fwd.1} parent=1 // pred_check_branch
      %436 = sbr.rel (0) target = $region17
    $region16: #{fwd.1} parent=1 // pred_region
      _
    $region17: #{fwd.1} parent=1 // pred_fallthru
      _
    // Predicated region
    $region18: #{fwd.1} parent=1 // pred_check
      _
    $region19: #{fwd.1} parent=1 // pred_check_branch
      %438 = sbr.rel (0) target = $region21
    $region20: #{fwd.1} parent=1 // pred_region
      _
    $region21: #{fwd.1} parent=1 // pred_fallthru
      _
    %439 = vsyncpa [#allocation3], 1

</llo_original>
